<compile_context>
chip_gen: v7x
topology: tpu7x:2x2x1
jax: 0.10.0
libtpu: 0.0.40
codegen_flags: <defaults>
</compile_context>

<pallas_src>
import jax
import jax.numpy as jnp
from jax.experimental import pallas as pl
from jax.experimental.pallas import tpu as pltpu


# ------------------------------ small helpers -------------------------------

def _round_up(n, m):
    return ((n + m - 1) // m) * m


def _pad2d(x, rows, cols):
    r, c = x.shape
    return jnp.pad(x, ((0, rows - r), (0, cols - c)))


def _vmem_capacity_bytes():
    """Generation-aware physical VMEM size (per TensorCore), with fallback."""
    try:
        return int(pltpu.get_tpu_info().vmem_capacity_bytes)
    except Exception:
        return 64 << 20  # conservative (v7x per-TC VMEM)


# --------------------------- graph preprocessing -----------------------------

def build_norm_adj(edge_index, num_nodes, edge_weight=None):
    """get_laplacian(sym) -> remove_self_loops -> negate, as a dense matrix.

    A[dst, src] = deg_inv_sqrt[src] * w * deg_inv_sqrt[dst], with degree taken
    over edge_index[0] (matching PyG's sym-normalization path).
    """
    src = edge_index[0]
    dst = edge_index[1]
    if edge_weight is None:
        edge_weight = jnp.ones(src.shape[0], dtype=jnp.float32)
    deg = jnp.zeros((num_nodes,), jnp.float32).at[src].add(edge_weight)
    deg_inv_sqrt = jnp.where(deg > 0, 1.0 / jnp.sqrt(deg), 0.0)
    norm = deg_inv_sqrt[src] * edge_weight * deg_inv_sqrt[dst]
    a = jnp.zeros((num_nodes, num_nodes), jnp.float32).at[dst, src].add(norm)
    return a


# ------------------------- fused (VMEM-resident) path ------------------------

def make_fused_gcn_kernel(num_layers, agg_first):
    """Fused whole-network kernel.

    Ref layout (positional): x, a, [w_l, bias_l] * num_layers, w_out, b_out, o.
      agg_first[l] == True : w_l is [W_in ; W_neigh] stacked along K
                             (2*Cin_p, Cout_p);  h = [X | A@X] @ w_l
      agg_first[l] == False: w_l is [W_in | W_neigh] along N (Cin_p, 2*Cout_p);
                             hc = X @ w_l; h = hc[:, :C] + A @ hc[:, C:]
    """

    def kernel(*refs):
        x_ref, a_ref = refs[0], refs[1]
        o_ref = refs[-1]

        x = x_ref[...]          # (Np, C0p)  bf16, resident in VMEM
        a = a_ref[...]          # (Np, Np)   bf16, loaded ONCE for all layers

        idx = 2
        for layer in range(num_layers):
            w = refs[idx][...]        # bf16 (see layout above)
            b = refs[idx + 1][...]    # (1, Coutp) f32
            idx += 2

            if agg_first[layer]:
                # cheaper when Cin_p < Cout_p: aggregate raw X first.
                ax = jnp.dot(a, x, preferred_element_type=jnp.float32)
                xc = jnp.concatenate([x, ax.astype(jnp.bfloat16)], axis=1)
                h = jnp.dot(xc, w, preferred_element_type=jnp.float32)
            else:
                # single X-side matmul of width 2*Cout_p (fills 256-wide MXU).
                cout = w.shape[1] // 2
                hc = jnp.dot(x, w, preferred_element_type=jnp.float32)
                h = hc[:, :cout] + jnp.dot(
                    a, hc[:, cout:].astype(jnp.bfloat16),
                    preferred_element_type=jnp.float32)

            # ReLU, then back to bf16 for the next MXU pass.
            x = jnp.maximum(h + b, 0.0).astype(jnp.bfloat16)

        w_out = refs[idx][...]        # (Clastp, Coutp) bf16
        b_out = refs[idx + 1][...]    # (1, Coutp)      f32
        o = jnp.dot(x, w_out, preferred_element_type=jnp.float32) + b_out
        o_ref[...] = o.astype(o_ref.dtype)   # lane-dense (Coutp multiple of 128)

    return kernel


# ----------------------- tiled (large-graph) path kernels --------------------

def _project_kernel(x_ref, w_ref, hin_ref, hng_ref):
    """[H_in | H_ng] = X_tile @ [W_in | W_neigh] (one MXU pass, width 2*Cout)."""
    h = jnp.dot(x_ref[...], w_ref[...], preferred_element_type=jnp.float32)
    c = hin_ref.shape[-1]
    hin_ref[...] = h[:, :c].astype(hin_ref.dtype)
    hng_ref[...] = h[:, c:].astype(hng_ref.dtype)


def _aggregate_kernel(hin_ref, a_ref, hng_ref, b_ref, o_ref, acc_ref):
    """out_tile = relu(H_in_tile + sum_s A[d,s] @ H_ng[s] + b), f32 accumulator."""
    s = pl.program_id(1)

    @pl.when(s == 0)
    def _():
        acc_ref[...] = hin_ref[...].astype(jnp.float32) + b_ref[...]

    acc_ref[...] += jnp.dot(a_ref[...], hng_ref[...],
                            preferred_element_type=jnp.float32)

    @pl.when(s == pl.num_programs(1) - 1)
    def _():
        o_ref[...] = jnp.maximum(acc_ref[...], 0.0).astype(o_ref.dtype)


def _linear_kernel(x_ref, w_ref, b_ref, o_ref):
    """Final output linear: out_tile = X_tile @ W_out + b_out."""
    o_ref[...] = (jnp.dot(x_ref[...], w_ref[...],
                          preferred_element_type=jnp.float32)
                  + b_ref[...]).astype(o_ref.dtype)


# ------------------------------- MyGCN model ---------------------------------

def init_params(key, dims):
    """Parameters matching the PyTorch module's shapes (stored [C_in, C_out])."""
    num_layers = len(dims) - 2
    params = {"layers": []}
    for i in range(num_layers):
        cin, cout = dims[i], dims[i + 1]
        key, k1, k2 = jax.random.split(key, 3)
        scale = 1.0 / jnp.sqrt(cin)
        params["layers"].append({
            "w_in": jax.random.uniform(k1, (cin, cout), jnp.float32, -scale, scale),
            "w_neigh": jax.random.uniform(k2, (cin, cout), jnp.float32, -scale, scale),
            "bias": jnp.zeros((1, cout), jnp.float32),  # nn.init.constant_(0)
        })
    cin, cout = dims[-2], dims[-1]
    key, k1, k2 = jax.random.split(key, 3)
    scale = 1.0 / jnp.sqrt(cin)
    params["out_w"] = jax.random.uniform(k1, (cin, cout), jnp.float32, -scale, scale)
    params["out_b"] = jax.random.uniform(k2, (1, cout), jnp.float32, -scale, scale)
    return params


def my_gcn_forward(params, x, edge_index, edge_weight=None, force_tiled=False):
    """Forward pass; picks the fused (VMEM-resident) or tiled path by VMEM fit."""
    N = x.shape[0]
    a = build_norm_adj(edge_index, N, edge_weight)

    layers = params["layers"]
    num_layers = len(layers)

    # ---- pad to TPU-friendly shapes: nodes & channels -> multiples of 128 ---
    c_orig = ([x.shape[1]]
              + [lp["w_in"].shape[1] for lp in layers]
              + [params["out_w"].shape[1]])
    c_pad = [_round_up(c, 128) for c in c_orig]
    Np = _round_up(max(N, 128), 128)

    xp = _pad2d(x, Np, c_pad[0]).astype(jnp.bfloat16)
    ap = _pad2d(a, Np, Np).astype(jnp.bfloat16)

    # ---- VMEM budget (generation-aware) --------------------------------------
    cap = _vmem_capacity_bytes()
    budget = int(cap * 0.85)                       # leave headroom for XLA

    args_bytes = Np * c_pad[0] * 2 + Np * Np * 2   # x, A (bf16)
    for i in range(num_layers):
        args_bytes += 2 * c_pad[i] * c_pad[i + 1] * 2 + c_pad[i + 1] * 4
    args_bytes += c_pad[-2] * c_pad[-1] * 2 + c_pad[-1] * 4
    out_bytes = Np * c_pad[-1] * 4
    inter_bytes = 6 * Np * max(c_pad) * 4          # live f32 temporaries/layer
    vmem_needed = 2 * args_bytes + 2 * out_bytes + inter_bytes + (8 << 20)

    use_fused = (not force_tiled) and (vmem_needed <= budget)

    # ======================== FUSED single-call path =========================
    if use_fused:
        args = [xp, ap]
        agg_first = []
        for i, lp in enumerate(layers):
            w_in_p = _pad2d(lp["w_in"], c_pad[i], c_pad[i + 1]).astype(jnp.bfloat16)
            w_ng_p = _pad2d(lp["w_neigh"], c_pad[i], c_pad[i + 1]).astype(jnp.bfloat16)
            af = c_pad[i] < c_pad[i + 1]           # decided on PADDED dims
            agg_first.append(af)
            w = (jnp.concatenate([w_in_p, w_ng_p], axis=0) if af
                 else jnp.concatenate([w_in_p, w_ng_p], axis=1))
            args.append(w)
            args.append(_pad2d(lp["bias"], 1, c_pad[i + 1]).astype(jnp.float32))
        args.append(_pad2d(params["out_w"], c_pad[-2], c_pad[-1]).astype(jnp.bfloat16))
        args.append(_pad2d(params["out_b"], 1, c_pad[-1]).astype(jnp.float32))

        def full_spec(shape):
            return pl.BlockSpec(shape, lambda i: (0,) * len(shape))

        kernel = make_fused_gcn_kernel(num_layers, tuple(agg_first))
        out = pl.pallas_call(
            kernel,
            out_shape=jax.ShapeDtypeStruct((Np, c_pad[-1]), jnp.float32),
            grid=(1,),
            in_specs=[full_spec(arr.shape) for arr in args],
            out_specs=full_spec((Np, c_pad[-1])),
            compiler_params=pltpu.CompilerParams(
                dimension_semantics=("arbitrary",),
                vmem_limit_bytes=int(min(budget, vmem_needed))),
        )(*args)
        return out[:N, :c_orig[-1]]

    # ======================= TILED per-layer path ============================
    # Parallel dst-node-tile grid per call; (dst, src) grid + accumulator for
    # the aggregation.  Weights use constant index_maps -> fetched once.
    tile = 128
    for cand in (512, 256):
        if Np % cand == 0:
            tile = cand
            break
    n_tiles = Np // tile

    h = xp  # (Np, Cin_p) bf16 activations live in HBM between layers
    for i, lp in enumerate(layers):
        cin, cout = c_pad[i], c_pad[i + 1]
        w_cat = jnp.concatenate(
            [_pad2d(lp["w_in"], cin, cout), _pad2d(lp["w_neigh"], cin, cout)],
            axis=1).astype(jnp.bfloat16)                       # (cin, 2*cout)
        b = _pad2d(lp["bias"], 1, cout).astype(jnp.float32)

        # 1) projection: [H_in | H_ng] = X @ [W_in | W_neigh]  (parallel tiles)
        h_in, h_ng = pl.pallas_call(
            _project_kernel,
            out_shape=(jax.ShapeDtypeStruct((Np, cout), jnp.bfloat16),
                       jax.ShapeDtypeStruct((Np, cout), jnp.bfloat16)),
            grid=(n_tiles,),
            in_specs=[pl.BlockSpec((tile, cin), lambda d: (d, 0)),
                      pl.BlockSpec((cin, 2 * cout), lambda d: (0, 0))],
            out_specs=(pl.BlockSpec((tile, cout), lambda d: (d, 0)),
                       pl.BlockSpec((tile, cout), lambda d: (d, 0))),
            compiler_params=pltpu.CompilerParams(
                dimension_semantics=("parallel",)),
        )(h, w_cat)

        # 2) aggregation: X_next = relu(H_in + A @ H_ng + b)
        h = pl.pallas_call(
            _aggregate_kernel,
            out_shape=jax.ShapeDtypeStruct((Np, cout), jnp.bfloat16),
            grid=(n_tiles, n_tiles),
            in_specs=[pl.BlockSpec((tile, cout), lambda d, s: (d, 0)),
                      pl.BlockSpec((tile, tile), lambda d, s: (d, s)),
                      pl.BlockSpec((tile, cout), lambda d, s: (s, 0)),
                      pl.BlockSpec((1, cout), lambda d, s: (0, 0))],
            out_specs=pl.BlockSpec((tile, cout), lambda d, s: (d, 0)),
            scratch_shapes=[pltpu.VMEM((tile, cout), jnp.float32)],
            compiler_params=pltpu.CompilerParams(
                dimension_semantics=("parallel", "arbitrary")),
        )(h_in, ap, h_ng, b)

    # 3) output linear
    w_out = _pad2d(params["out_w"], c_pad[-2], c_pad[-1]).astype(jnp.bfloat16)
    b_out = _pad2d(params["out_b"], 1, c_pad[-1]).astype(jnp.float32)
    out = pl.pallas_call(
        _linear_kernel,
        out_shape=jax.ShapeDtypeStruct((Np, c_pad[-1]), jnp.float32),
        grid=(n_tiles,),
        in_specs=[pl.BlockSpec((tile, c_pad[-2]), lambda d: (d, 0)),
                  pl.BlockSpec((c_pad[-2], c_pad[-1]), lambda d: (0, 0)),
                  pl.BlockSpec((1, c_pad[-1]), lambda d: (0, 0))],
        out_specs=pl.BlockSpec((tile, c_pad[-1]), lambda d: (d, 0)),
        compiler_params=pltpu.CompilerParams(
            dimension_semantics=("parallel",)),
    )(h, w_out, b_out)

    return out[:N, :c_orig[-1]]


def my_gcn_reference(params, x, edge_index, edge_weight=None):
    """Pure-JAX f32 reference for correctness checking."""
    a = build_norm_adj(edge_index, x.shape[0], edge_weight)
    for lp in params["layers"]:
        x = jnp.maximum(x @ lp["w_in"] + a @ (x @ lp["w_neigh"]) + lp["bias"], 0.0)
    return x @ params["out_w"] + params["out_b"]


def _ring_edges(n):
    src = jnp.concatenate([jnp.arange(n), (jnp.arange(n) + 1) % n])
    dst = jnp.concatenate([(jnp.arange(n) + 1) % n, jnp.arange(n)])
    return jnp.stack([src, dst]).astype(jnp.int32)


# ---------------------------------- main --------------------------------------

if __name__ == "__main__":
    key = jax.random.PRNGKey(0)

    # dims = [in, hidden, hidden, out] -> 2 GCN layers + output linear
    dims = [8, 32, 32, 16]
    key, kx, kp = jax.random.split(key, 3)
    params = init_params(kp, dims)

    # --- small graph: fused whole-network-in-VMEM path -----------------------
    N = 16
    x = jax.random.normal(kx, (N, dims[0]), jnp.float32)
    edge_index = _ring_edges(N)  # deterministic undirected ring

    out = jax.block_until_ready(my_gcn_forward(params, x, edge_index))
    ref = my_gcn_reference(params, x, edge_index)
    assert out.shape == (N, dims[-1])
    # bf16 MXU inputs with f32 accumulation -> looser tolerance vs f32 reference
    assert jnp.allclose(out, ref, atol=5e-2, rtol=5e-2), (
        float(jnp.max(jnp.abs(out - ref))))

    # --- larger graph: exercise the tiled (parallel dst-tile grid) path ------
    N2 = 300
    key, kx2 = jax.random.split(key)
    x2 = jax.random.normal(kx2, (N2, dims[0]), jnp.float32)
    edge_index2 = _ring_edges(N2)

    out2 = jax.block_until_ready(
        my_gcn_forward(params, x2, edge_index2, force_tiled=True))
    ref2 = my_gcn_reference(params, x2, edge_index2)
    assert out2.shape == (N2, dims[-1])
    assert jnp.allclose(out2, ref2, atol=1e-1, rtol=5e-2), (
        float(jnp.max(jnp.abs(out2 - ref2))))

    print("KERNEL_OK")
</pallas_src>

<mosaic_0001>
module attributes {stable_mosaic.version = 11 : i64} {
  func.func @kernel(%arg0: i32, %arg1: memref<128x128xbf16, #tpu.memory_space<vmem>>, %arg2: memref<128x128xbf16, #tpu.memory_space<vmem>>, %arg3: memref<128x256xbf16, #tpu.memory_space<vmem>>, %arg4: memref<1x128xf32, #tpu.memory_space<vmem>>, %arg5: memref<128x256xbf16, #tpu.memory_space<vmem>>, %arg6: memref<1x128xf32, #tpu.memory_space<vmem>>, %arg7: memref<128x128xbf16, #tpu.memory_space<vmem>>, %arg8: memref<1x128xf32, #tpu.memory_space<vmem>>, %arg9: memref<128x128xf32, #tpu.memory_space<vmem>>) attributes {dimension_semantics = [#tpu.dimension_semantics<arbitrary>], iteration_bounds = array<i64: 1>, scalar_prefetch = 0 : i64, scratch_operands = 0 : i64, tpu.core_type = #tpu.core_type<tc>, window_params = [{pipeline_mode = #tpu.pipeline_mode<synchronous>, transform_indices = @transform_0, window_bounds = array<i64: 128, 128>}, {pipeline_mode = #tpu.pipeline_mode<synchronous>, transform_indices = @transform_1, window_bounds = array<i64: 128, 128>}, {pipeline_mode = #tpu.pipeline_mode<synchronous>, transform_indices = @transform_2, window_bounds = array<i64: 128, 256>}, {pipeline_mode = #tpu.pipeline_mode<synchronous>, transform_indices = @transform_3, window_bounds = array<i64: 1, 128>}, {pipeline_mode = #tpu.pipeline_mode<synchronous>, transform_indices = @transform_4, window_bounds = array<i64: 128, 256>}, {pipeline_mode = #tpu.pipeline_mode<synchronous>, transform_indices = @transform_5, window_bounds = array<i64: 1, 128>}, {pipeline_mode = #tpu.pipeline_mode<synchronous>, transform_indices = @transform_6, window_bounds = array<i64: 128, 128>}, {pipeline_mode = #tpu.pipeline_mode<synchronous>, transform_indices = @transform_7, window_bounds = array<i64: 1, 128>}, {pipeline_mode = #tpu.pipeline_mode<synchronous>, transform_indices = @transform_8, window_bounds = array<i64: 128, 128>}]} {
    %c0 = arith.constant 0 : index
    %c0_0 = arith.constant 0 : index
    %0 = vector.load %arg1[%c0, %c0_0] : memref<128x128xbf16, #tpu.memory_space<vmem>>, vector<128x128xbf16>
    %c0_1 = arith.constant 0 : index
    %c0_2 = arith.constant 0 : index
    %1 = vector.load %arg2[%c0_1, %c0_2] : memref<128x128xbf16, #tpu.memory_space<vmem>>, vector<128x128xbf16>
    %c0_3 = arith.constant 0 : index
    %c0_4 = arith.constant 0 : index
    %2 = vector.load %arg3[%c0_3, %c0_4] : memref<128x256xbf16, #tpu.memory_space<vmem>>, vector<128x256xbf16>
    %c0_5 = arith.constant 0 : index
    %c0_6 = arith.constant 0 : index
    %3 = vector.load %arg4[%c0_5, %c0_6] : memref<1x128xf32, #tpu.memory_space<vmem>>, vector<1x128xf32>
    %cst = arith.constant dense<0.000000e+00> : vector<128x256xf32>
    %4 = tpu.matmul %0, %2, %cst {dimension_numbers = #tpu.dot_dimension_numbers<[1], [0], [0], [1], [0, 0, 1, 1], [], []>} : vector<128x128xbf16>, vector<128x256xbf16>, vector<128x256xf32> -> vector<128x256xf32>
    %5 = vector.extract_strided_slice %4 {offsets = [0, 0], sizes = [128, 128], strides = [1, 1]} : vector<128x256xf32> to vector<128x128xf32>
    %6 = vector.extract_strided_slice %4 {offsets = [0, 128], sizes = [128, 128], strides = [1, 1]} : vector<128x256xf32> to vector<128x128xf32>
    %7 = arith.truncf %6 : vector<128x128xf32> to vector<128x128xbf16>
    %cst_7 = arith.constant dense<0.000000e+00> : vector<128x128xf32>
    %8 = tpu.matmul %1, %7, %cst_7 {dimension_numbers = #tpu.dot_dimension_numbers<[1], [0], [0], [1], [0, 0, 1, 1], [], []>} : vector<128x128xbf16>, vector<128x128xbf16>, vector<128x128xf32> -> vector<128x128xf32>
    %9 = arith.addf %5, %8 : vector<128x128xf32>
    %10 = vector.broadcast %3 : vector<1x128xf32> to vector<128x128xf32>
    %11 = arith.addf %9, %10 : vector<128x128xf32>
    %cst_8 = arith.constant 0.000000e+00 : f32
    %12 = vector.broadcast %cst_8 : f32 to vector<128x128xf32>
    %13 = arith.maximumf %11, %12 : vector<128x128xf32>
    %14 = arith.truncf %13 : vector<128x128xf32> to vector<128x128xbf16>
    %c0_9 = arith.constant 0 : index
    %c0_10 = arith.constant 0 : index
    %15 = vector.load %arg5[%c0_9, %c0_10] : memref<128x256xbf16, #tpu.memory_space<vmem>>, vector<128x256xbf16>
    %c0_11 = arith.constant 0 : index
    %c0_12 = arith.constant 0 : index
    %16 = vector.load %arg6[%c0_11, %c0_12] : memref<1x128xf32, #tpu.memory_space<vmem>>, vector<1x128xf32>
    %cst_13 = arith.constant dense<0.000000e+00> : vector<128x256xf32>
    %17 = tpu.matmul %14, %15, %cst_13 {dimension_numbers = #tpu.dot_dimension_numbers<[1], [0], [0], [1], [0, 0, 1, 1], [], []>} : vector<128x128xbf16>, vector<128x256xbf16>, vector<128x256xf32> -> vector<128x256xf32>
    %18 = vector.extract_strided_slice %17 {offsets = [0, 0], sizes = [128, 128], strides = [1, 1]} : vector<128x256xf32> to vector<128x128xf32>
    %19 = vector.extract_strided_slice %17 {offsets = [0, 128], sizes = [128, 128], strides = [1, 1]} : vector<128x256xf32> to vector<128x128xf32>
    %20 = arith.truncf %19 : vector<128x128xf32> to vector<128x128xbf16>
    %cst_14 = arith.constant dense<0.000000e+00> : vector<128x128xf32>
    %21 = tpu.matmul %1, %20, %cst_14 {dimension_numbers = #tpu.dot_dimension_numbers<[1], [0], [0], [1], [0, 0, 1, 1], [], []>} : vector<128x128xbf16>, vector<128x128xbf16>, vector<128x128xf32> -> vector<128x128xf32>
    %22 = arith.addf %18, %21 : vector<128x128xf32>
    %23 = vector.broadcast %16 : vector<1x128xf32> to vector<128x128xf32>
    %24 = arith.addf %22, %23 : vector<128x128xf32>
    %cst_15 = arith.constant 0.000000e+00 : f32
    %25 = vector.broadcast %cst_15 : f32 to vector<128x128xf32>
    %26 = arith.maximumf %24, %25 : vector<128x128xf32>
    %27 = arith.truncf %26 : vector<128x128xf32> to vector<128x128xbf16>
    %c0_16 = arith.constant 0 : index
    %c0_17 = arith.constant 0 : index
    %28 = vector.load %arg7[%c0_16, %c0_17] : memref<128x128xbf16, #tpu.memory_space<vmem>>, vector<128x128xbf16>
    %c0_18 = arith.constant 0 : index
    %c0_19 = arith.constant 0 : index
    %29 = vector.load %arg8[%c0_18, %c0_19] : memref<1x128xf32, #tpu.memory_space<vmem>>, vector<1x128xf32>
    %cst_20 = arith.constant dense<0.000000e+00> : vector<128x128xf32>
    %30 = tpu.matmul %27, %28, %cst_20 {dimension_numbers = #tpu.dot_dimension_numbers<[1], [0], [0], [1], [0, 0, 1, 1], [], []>} : vector<128x128xbf16>, vector<128x128xbf16>, vector<128x128xf32> -> vector<128x128xf32>
    %31 = vector.broadcast %29 : vector<1x128xf32> to vector<128x128xf32>
    %32 = arith.addf %30, %31 : vector<128x128xf32>
    %c0_21 = arith.constant 0 : index
    %c0_22 = arith.constant 0 : index
    %33 = vector.load %arg9[%c0_21, %c0_22] : memref<128x128xf32, #tpu.memory_space<vmem>>, vector<128x128xf32>
    tpu.vector_store %arg9[%c0_21, %c0_22], %32 {strides = array<i32>} : memref<128x128xf32, #tpu.memory_space<vmem>>, vector<128x128xf32>,
    return
  }
  func.func @transform_0(%arg0: i32) -> (i32, i32) {
    %c0_i32 = arith.constant 0 : i32
    %c0_i32_0 = arith.constant 0 : i32
    %c0_i32_1 = arith.constant 0 : i32
    return %c0_i32, %c0_i32_0 : i32, i32
  }
  func.func @transform_1(%arg0: i32) -> (i32, i32) {
    %c0_i32 = arith.constant 0 : i32
    %c0_i32_0 = arith.constant 0 : i32
    %c0_i32_1 = arith.constant 0 : i32
    return %c0_i32, %c0_i32_0 : i32, i32
  }
  func.func @transform_2(%arg0: i32) -> (i32, i32) {
    %c0_i32 = arith.constant 0 : i32
    %c0_i32_0 = arith.constant 0 : i32
    %c0_i32_1 = arith.constant 0 : i32
    return %c0_i32, %c0_i32_0 : i32, i32
  }
  func.func @transform_3(%arg0: i32) -> (i32, i32) {
    %c0_i32 = arith.constant 0 : i32
    %c0_i32_0 = arith.constant 0 : i32
    %c0_i32_1 = arith.constant 0 : i32
    return %c0_i32, %c0_i32_0 : i32, i32
  }
  func.func @transform_4(%arg0: i32) -> (i32, i32) {
    %c0_i32 = arith.constant 0 : i32
    %c0_i32_0 = arith.constant 0 : i32
    %c0_i32_1 = arith.constant 0 : i32
    return %c0_i32, %c0_i32_0 : i32, i32
  }
  func.func @transform_5(%arg0: i32) -> (i32, i32) {
    %c0_i32 = arith.constant 0 : i32
    %c0_i32_0 = arith.constant 0 : i32
    %c0_i32_1 = arith.constant 0 : i32
    return %c0_i32, %c0_i32_0 : i32, i32
  }
  func.func @transform_6(%arg0: i32) -> (i32, i32) {
    %c0_i32 = arith.constant 0 : i32
    %c0_i32_0 = arith.constant 0 : i32
    %c0_i32_1 = arith.constant 0 : i32
    return %c0_i32, %c0_i32_0 : i32, i32
  }
  func.func @transform_7(%arg0: i32) -> (i32, i32) {
    %c0_i32 = arith.constant 0 : i32
    %c0_i32_0 = arith.constant 0 : i32
    %c0_i32_1 = arith.constant 0 : i32
    return %c0_i32, %c0_i32_0 : i32, i32
  }
  func.func @transform_8(%arg0: i32) -> (i32, i32) {
    %c0_i32 = arith.constant 0 : i32
    %c0_i32_0 = arith.constant 0 : i32
    %c0_i32_1 = arith.constant 0 : i32
    return %c0_i32, %c0_i32_0 : i32, i32
  }
}

</mosaic_0001>

<llo_original>
// kernel: tpu_custom_call.1
$region0: #{tpu_custom_call.1}
  #allocation0 [shape = 'u32[]', space=smem, size = 0x4, offset = 0x4, fixed_abs, tag = 'smem constant byte address 0x4 - core index']
  #allocation1 [shape = 'u32[144,128]{1,0:T(1,128)}', space=vmem, size = 0x12000, scoped, tag = 'internal scratch']
  %s0 = inlined_call_operand.hbm [shape: bf16[128,128], index: 0, kind: input, shape index: {}]
  %s1 = inlined_call_operand.hbm [shape: bf16[128,128], index: 1, kind: input, shape index: {}]
  %s2 = inlined_call_operand.hbm [shape: bf16[128,256], index: 2, kind: input, shape index: {}]
  %s3 = inlined_call_operand.vmem [shape: f32[1,128], index: 3, kind: input, shape index: {}]
  %s4 = inlined_call_operand.hbm [shape: bf16[128,256], index: 4, kind: input, shape index: {}]
  %s5 = inlined_call_operand.vmem [shape: f32[1,128], index: 5, kind: input, shape index: {}]
  %s6 = inlined_call_operand.hbm [shape: bf16[128,128], index: 6, kind: input, shape index: {}]
  %s7 = inlined_call_operand.vmem [shape: f32[1,128], index: 7, kind: input, shape index: {}]
  %s8 = inlined_call_operand.hbm [shape: f32[128,128], index: 8, kind: output, shape index: {}]
  %s9 = sld [smem:[#allocation0]]
  $region62: #{tpu_custom_call.1} parent=0
    _
  %s11 = ssub.s32 1, %s9
  %s12 = scalar_select 0, %s11, %s9
  $region1: #{tpu_custom_call.1} parent=0
    #allocation2 [shape = 'u8[32768]{0}', space=vmem, size = 0x8000, scoped, tag = 'input window, operand 0, single buffered']
    #allocation3 [shape = 's32[1]{0}', space=sflag, size = 0x4, scoped, tag = 'scoped memory for tpu_custom_call.1']
    #allocation4 [shape = 's32[1]{0}', space=sflag, size = 0x4, scoped, tag = 'scoped memory for tpu_custom_call.1']
    #allocation5 [shape = 'u8[32768]{0}', space=vmem, size = 0x8000, scoped, tag = 'input window, operand 1, single buffered']
    #allocation6 [shape = 's32[1]{0}', space=sflag, size = 0x4, scoped, tag = 'scoped memory for tpu_custom_call.1']
    #allocation7 [shape = 'u8[65536]{0}', space=vmem, size = 0x10000, scoped, tag = 'input window, operand 2, single buffered']
    #allocation8 [shape = 'u8[65536]{0}', space=vmem, size = 0x10000, scoped, tag = 'input window, operand 4, single buffered']
    #allocation9 [shape = 's32[1]{0}', space=sflag, size = 0x4, scoped, tag = 'scoped memory for tpu_custom_call.1']
    #allocation10 [shape = 'u8[32768]{0}', space=vmem, size = 0x8000, scoped, tag = 'input window, operand 6, single buffered']
    #allocation11 [shape = 'u8[65536]{0}', space=vmem, size = 0x10000, scoped, tag = 'output window, operand 0, single buffered']
    %13 = vsyncpa [#allocation3], 0
    %14 = vsyncpa [#allocation6], 0
    %15 = vsyncpa [#allocation9], 0
    %16 = vsyncpa [#allocation4], 0
    // Predicated region
    $region2: #{tpu_custom_call.1} parent=1 // pred_check
      _
    $region3: #{tpu_custom_call.1} parent=1 // pred_check_branch
      %18 = sbr.rel (0) target = $region5
    $region4: #{tpu_custom_call.1} parent=1 // pred_region
      %s20 = ssub.s32 1024, 1024
      %21 = vsyncadd [#allocation3], %s20
      %s22 = sshll.u32 [#allocation2], 4
      %s23 = int_to_ptr.vmem [resolvable:$true] %s22
      %28 = dma.hbm_to_vmem [thread:$0]  %s0, 1024, %s23, [#allocation3], 64, 64, 4
    $region5: #{tpu_custom_call.1} parent=1 // pred_fallthru
      _
    // Predicated region
    $region6: #{tpu_custom_call.1} parent=1 // pred_check
      _
    $region7: #{tpu_custom_call.1} parent=1 // pred_check_branch
      %30 = sbr.rel (0) target = $region9
    $region8: #{tpu_custom_call.1} parent=1 // pred_region
      %s32 = ssub.s32 1024, 1024
      %33 = vsyncadd [#allocation6], %s32
      %s34 = sshll.u32 [#allocation5], 4
      %s35 = int_to_ptr.vmem [resolvable:$true] %s34
      %40 = dma.hbm_to_vmem [thread:$0]  %s1, 1024, %s35, [#allocation6], 64, 64, 4
    $region9: #{tpu_custom_call.1} parent=1 // pred_fallthru
      _
    // Predicated region
    $region10: #{tpu_custom_call.1} parent=1 // pred_check
      _
    $region11: #{tpu_custom_call.1} parent=1 // pred_check_branch
      %42 = sbr.rel (0) target = $region13
    $region12: #{tpu_custom_call.1} parent=1 // pred_region
      %s44 = ssub.s32 2048, 2048
      %45 = vsyncadd [#allocation6], %s44
      %s46 = sshll.u32 [#allocation7], 4
      %s47 = int_to_ptr.vmem [resolvable:$true] %s46
      %52 = dma.hbm_to_vmem [thread:$0]  %s2, 2048, %s47, [#allocation6], 128, 128, 8
    $region13: #{tpu_custom_call.1} parent=1 // pred_fallthru
      _
    // Predicated region
    $region14: #{tpu_custom_call.1} parent=1 // pred_check
      _
    $region15: #{tpu_custom_call.1} parent=1 // pred_check_branch
      %54 = sbr.rel (0) target = $region17
    $region16: #{tpu_custom_call.1} parent=1 // pred_region
      _
    $region17: #{tpu_custom_call.1} parent=1 // pred_fallthru
      _
    // Predicated region
    $region18: #{tpu_custom_call.1} parent=1 // pred_check
      _
    $region19: #{tpu_custom_call.1} parent=1 // pred_check_branch
      %56 = sbr.rel (0) target = $region21
    $region20: #{tpu_custom_call.1} parent=1 // pred_region
      %s58 = ssub.s32 2048, 2048
      %59 = vsyncadd [#allocation9], %s58
      %s60 = sshll.u32 [#allocation8], 4
      %s61 = int_to_ptr.vmem [resolvable:$true] %s60
      %66 = dma.hbm_to_vmem [thread:$0]  %s4, 2048, %s61, [#allocation9], 128, 128, 8
    $region21: #{tpu_custom_call.1} parent=1 // pred_fallthru
      _
    // Predicated region
    $region22: #{tpu_custom_call.1} parent=1 // pred_check
      _
    $region23: #{tpu_custom_call.1} parent=1 // pred_check_branch
      %68 = sbr.rel (0) target = $region25
    $region24: #{tpu_custom_call.1} parent=1 // pred_region
      _
    $region25: #{tpu_custom_call.1} parent=1 // pred_fallthru
      _
    // Predicated region
    $region26: #{tpu_custom_call.1} parent=1 // pred_check
      _
    $region27: #{tpu_custom_call.1} parent=1 // pred_check_branch
      %70 = sbr.rel (0) target = $region29
    $region28: #{tpu_custom_call.1} parent=1 // pred_region
      %s72 = ssub.s32 1024, 1024
      %73 = vsyncadd [#allocation9], %s72
      %s74 = sshll.u32 [#allocation10], 4
      %s75 = int_to_ptr.vmem [resolvable:$true] %s74
      %80 = dma.hbm_to_vmem [thread:$0]  %s6, 1024, %s75, [#allocation9], 64, 64, 4
    $region29: #{tpu_custom_call.1} parent=1 // pred_fallthru
      _
    // Predicated region
    $region30: #{tpu_custom_call.1} parent=1 // pred_check
      _
    $region31: #{tpu_custom_call.1} parent=1 // pred_check_branch
      %82 = sbr.rel (0) target = $region33
    $region32: #{tpu_custom_call.1} parent=1 // pred_region
      _
    $region33: #{tpu_custom_call.1} parent=1 // pred_fallthru
      _
    // Predicated region
    $region34: #{tpu_custom_call.1} parent=1 // pred_check
      _
    $region35: #{tpu_custom_call.1} parent=1 // pred_check_branch
      %84 = sbr.rel (0) target = $region37
    $region36: #{tpu_custom_call.1} parent=1 // pred_region
      %85 = dma.done [#allocation3], 1024
    $region37: #{tpu_custom_call.1} parent=1 // pred_fallthru
      _
    // Predicated region
    $region38: #{tpu_custom_call.1} parent=1 // pred_check
      _
    $region39: #{tpu_custom_call.1} parent=1 // pred_check_branch
      %87 = sbr.rel (0) target = $region41
    $region40: #{tpu_custom_call.1} parent=1 // pred_region
      %88 = dma.done [#allocation6], 1024
    $region41: #{tpu_custom_call.1} parent=1 // pred_fallthru
      _
    // Predicated region
    $region42: #{tpu_custom_call.1} parent=1 // pred_check
      _
    $region43: #{tpu_custom_call.1} parent=1 // pred_check_branch
      %90 = sbr.rel (0) target = $region45
    $region44: #{tpu_custom_call.1} parent=1 // pred_region
      %91 = dma.done [#allocation6], 2048
    $region45: #{tpu_custom_call.1} parent=1 // pred_fallthru
      _
    // Predicated region
    $region46: #{tpu_custom_call.1} parent=1 // pred_check
      _
    $region47: #{tpu_custom_call.1} parent=1 // pred_check_branch
      %93 = sbr.rel (0) target = $region49
    $region48: #{tpu_custom_call.1} parent=1 // pred_region
      %94 = dma.done [#allocation9], 2048
    $region49: #{tpu_custom_call.1} parent=1 // pred_fallthru
      _
    // Predicated region
    $region50: #{tpu_custom_call.1} parent=1 // pred_check
      _
    $region51: #{tpu_custom_call.1} parent=1 // pred_check_branch
      %96 = sbr.rel (0) target = $region53
    $region52: #{tpu_custom_call.1} parent=1 // pred_region
      %97 = dma.done [#allocation9], 1024
    $region53: #{tpu_custom_call.1} parent=1 // pred_fallthru
      _
    %v99 = vld [vmem:[#allocation2] sm:$0xf]
    %v100 = vld [vmem:[#allocation2 + $0x4] sm:$0xf]
    %v101 = vld [vmem:[#allocation2 + $0x8] sm:$0xf]
    %v102 = vld [vmem:[#allocation2 + $0xc] sm:$0xf]
    %v103 = vld [vmem:[#allocation2 + $0x10] sm:$0xf]
    %v104 = vld [vmem:[#allocation2 + $0x14] sm:$0xf]
    %v105 = vld [vmem:[#allocation2 + $0x18] sm:$0xf]
    %v106 = vld [vmem:[#allocation2 + $0x1c] sm:$0xf]
    %v107 = vld [vmem:[#allocation2 + $0x20] sm:$0xf]
    %v108 = vld [vmem:[#allocation2 + $0x24] sm:$0xf]
    %v109 = vld [vmem:[#allocation2 + $0x28] sm:$0xf]
    %v110 = vld [vmem:[#allocation2 + $0x2c] sm:$0xf]
    %v111 = vld [vmem:[#allocation2 + $0x30] sm:$0xf]
    %v112 = vld [vmem:[#allocation2 + $0x34] sm:$0xf]
    %v113 = vld [vmem:[#allocation2 + $0x38] sm:$0xf]
    %v114 = vld [vmem:[#allocation2 + $0x3c] sm:$0xf]
    %v115 = vld [vmem:[#allocation5] sm:$0xf]
    %v116 = vld [vmem:[#allocation5 + $0x4] sm:$0xf]
    %v117 = vld [vmem:[#allocation5 + $0x8] sm:$0xf]
    %v118 = vld [vmem:[#allocation5 + $0xc] sm:$0xf]
    %v119 = vld [vmem:[#allocation5 + $0x10] sm:$0xf]
    %v120 = vld [vmem:[#allocation5 + $0x14] sm:$0xf]
    %v121 = vld [vmem:[#allocation5 + $0x18] sm:$0xf]
    %v122 = vld [vmem:[#allocation5 + $0x1c] sm:$0xf]
    %v123 = vld [vmem:[#allocation5 + $0x20] sm:$0xf]
    %v124 = vld [vmem:[#allocation5 + $0x24] sm:$0xf]
    %v125 = vld [vmem:[#allocation5 + $0x28] sm:$0xf]
    %v126 = vld [vmem:[#allocation5 + $0x2c] sm:$0xf]
    %v127 = vld [vmem:[#allocation5 + $0x30] sm:$0xf]
    %v128 = vld [vmem:[#allocation5 + $0x34] sm:$0xf]
    %v129 = vld [vmem:[#allocation5 + $0x38] sm:$0xf]
    %v130 = vld [vmem:[#allocation5 + $0x3c] sm:$0xf]
    %v131 = vld [vmem:[#allocation7] sm:$0xff]
    %v132 = vld [vmem:[#allocation7 + $0x8] sm:$0xff]
    %v133 = vld [vmem:[#allocation7 + $0x10] sm:$0xff]
    %v134 = vld [vmem:[#allocation7 + $0x18] sm:$0xff]
    %v135 = vld [vmem:[#allocation7 + $0x20] sm:$0xff]
    %v136 = vld [vmem:[#allocation7 + $0x28] sm:$0xff]
    %v137 = vld [vmem:[#allocation7 + $0x30] sm:$0xff]
    %v138 = vld [vmem:[#allocation7 + $0x38] sm:$0xff]
    %v139 = vld [vmem:[#allocation7 + $0x40] sm:$0xff]
    %v140 = vld [vmem:[#allocation7 + $0x48] sm:$0xff]
    %v141 = vld [vmem:[#allocation7 + $0x50] sm:$0xff]
    %v142 = vld [vmem:[#allocation7 + $0x58] sm:$0xff]
    %v143 = vld [vmem:[#allocation7 + $0x60] sm:$0xff]
    %v144 = vld [vmem:[#allocation7 + $0x68] sm:$0xff]
    %v145 = vld [vmem:[#allocation7 + $0x70] sm:$0xff]
    %v146 = vld [vmem:[#allocation7 + $0x78] sm:$0xff]
    %v147 = vld [vmem:[%s3] sm:$0x1]
    %v164 = vunpack.c.l.b16 %v99
    %v165 = vunpack.c.l.b16 %v100
    %v166 = vunpack.c.l.b16 %v101
    %v167 = vunpack.c.l.b16 %v102
    %v168 = vunpack.c.l.b16 %v103
    %v169 = vunpack.c.l.b16 %v104
    %v170 = vunpack.c.l.b16 %v105
    %v171 = vunpack.c.l.b16 %v106
    %v172 = vunpack.c.l.b16 %v107
    %v173 = vunpack.c.l.b16 %v108
    %v174 = vunpack.c.l.b16 %v109
    %v175 = vunpack.c.l.b16 %v110
    %v176 = vunpack.c.l.b16 %v111
    %v177 = vunpack.c.l.b16 %v112
    %v178 = vunpack.c.l.b16 %v113
    %v179 = vunpack.c.l.b16 %v114
    %v180 = vpack.c.b16 %v165, %v164
    %v181 = vpack.c.b16 %v167, %v166
    %v182 = vpack.c.b16 %v169, %v168
    %v183 = vpack.c.b16 %v171, %v170
    %v184 = vpack.c.b16 %v173, %v172
    %v185 = vpack.c.b16 %v175, %v174
    %v186 = vpack.c.b16 %v177, %v176
    %v187 = vpack.c.b16 %v179, %v178
    %v212 = vunpack.c.l.b16 %v131
    %v213 = vunpack.c.h.b16 %v131
    %v214 = vunpack.c.l.b16 %v132
    %v215 = vunpack.c.h.b16 %v132
    %v216 = vunpack.c.l.b16 %v133
    %v217 = vunpack.c.h.b16 %v133
    %v218 = vunpack.c.l.b16 %v134
    %v219 = vunpack.c.h.b16 %v134
    %v220 = vunpack.c.l.b16 %v135
    %v221 = vunpack.c.h.b16 %v135
    %v222 = vunpack.c.l.b16 %v136
    %v223 = vunpack.c.h.b16 %v136
    %v224 = vunpack.c.l.b16 %v137
    %v225 = vunpack.c.h.b16 %v137
    %v226 = vunpack.c.l.b16 %v138
    %v227 = vunpack.c.h.b16 %v138
    %v228 = vunpack.c.l.b16 %v139
    %v229 = vunpack.c.h.b16 %v139
    %v230 = vunpack.c.l.b16 %v140
    %v231 = vunpack.c.h.b16 %v140
    %v232 = vunpack.c.l.b16 %v141
    %v233 = vunpack.c.h.b16 %v141
    %v234 = vunpack.c.l.b16 %v142
    %v235 = vunpack.c.h.b16 %v142
    %v236 = vunpack.c.l.b16 %v143
    %v237 = vunpack.c.h.b16 %v143
    %v238 = vunpack.c.l.b16 %v144
    %v239 = vunpack.c.h.b16 %v144
    %v240 = vunpack.c.l.b16 %v145
    %v241 = vunpack.c.h.b16 %v145
    %v242 = vunpack.c.l.b16 %v146
    %v243 = vunpack.c.h.b16 %v146
    %v244 = vpack.c.b16 %v214, %v212
    %v245 = vpack.c.b16 %v215, %v213
    %v246 = vpack.c.b16 %v218, %v216
    %v247 = vpack.c.b16 %v219, %v217
    %v248 = vpack.c.b16 %v222, %v220
    %v249 = vpack.c.b16 %v223, %v221
    %v250 = vpack.c.b16 %v226, %v224
    %v251 = vpack.c.b16 %v227, %v225
    %v252 = vpack.c.b16 %v230, %v228
    %v253 = vpack.c.b16 %v231, %v229
    %v254 = vpack.c.b16 %v234, %v232
    %v255 = vpack.c.b16 %v235, %v233
    %v256 = vpack.c.b16 %v238, %v236
    %v257 = vpack.c.b16 %v239, %v237
    %v258 = vpack.c.b16 %v242, %v240
    %v259 = vpack.c.b16 %v243, %v241
    %276 = vmatprep.subr.bf16.mxu0 %v245
    %277 = vmatpush1.bf16.msra.mxu0 %v244
    %278 = vmatprep.subr.bf16.mxu0 %v247
    %279 = vmatpush1.bf16.msra.mxu0 %v246
    %280 = vmatprep.subr.bf16.mxu0 %v249
    %281 = vmatpush1.bf16.msra.mxu0 %v248
    %282 = vmatprep.subr.bf16.mxu0 %v251
    %283 = vmatpush1.bf16.msra.mxu0 %v250
    %284 = vmatprep.subr.bf16.mxu0 %v253
    %285 = vmatpush1.bf16.msra.mxu0 %v252
    %286 = vmatprep.subr.bf16.mxu0 %v255
    %287 = vmatpush1.bf16.msra.mxu0 %v254
    %288 = vmatprep.subr.bf16.mxu0 %v257
    %289 = vmatpush1.bf16.msra.mxu0 %v256
    %290 = vmatprep.subr.bf16.mxu0 %v259
    %291 = vmatpush1.bf16.msra.mxu0 %v258
    %292 = vmatprep.subr.bf16.mxu0 0
    %293 = vmatpush1.bf16.msra.mxu0 0
    %294 = vmatprep.subr.bf16.mxu0 0
    %295 = vmatpush1.bf16.msra.mxu0 0
    %296 = vmatprep.subr.bf16.mxu0 0
    %297 = vmatpush1.bf16.msra.mxu0 0
    %298 = vmatprep.subr.bf16.mxu0 0
    %299 = vmatpush1.bf16.msra.mxu0 0
    %300 = vmatprep.subr.bf16.mxu0 0
    %301 = vmatpush1.bf16.msra.mxu0 0
    %302 = vmatprep.subr.bf16.mxu0 0
    %303 = vmatpush1.bf16.msra.mxu0 0
    %304 = vmatprep.subr.bf16.mxu0 0
    %305 = vmatpush1.bf16.msra.mxu0 0
    %306 = vmatprep.subr.bf16.mxu0 0
    %307 = vmatpush1.bf16.msra.mxu0 0
    %308 = vmatprep.mubr.bf16.mxu0 0
    %309 = vmatmul.mubr.bf16.gmra.mrb[0].mxu0 %v180
    %v310 = vpop.f32.mrb[0].mxu0
    %v311 = vadd.f32 0.0, %v310
    %v312 = vpop.f32.mrb[0].mxu0
    %v313 = vadd.f32 0.0, %v312
    %v314 = vpop.f32.mrb[0].mxu0
    %v315 = vadd.f32 0.0, %v314
    %v316 = vpop.f32.mrb[0].mxu0
    %v317 = vadd.f32 0.0, %v316
    %318 = vmatprep.mubr.bf16.mxu0 0
    %319 = vmatmul.mubr.bf16.gmra.mrb[0].mxu0 %v181
    %v320 = vpop.f32.mrb[0].mxu0
    %v321 = vadd.f32 0.0, %v320
    %v322 = vpop.f32.mrb[0].mxu0
    %v323 = vadd.f32 0.0, %v322
    %v324 = vpop.f32.mrb[0].mxu0
    %v325 = vadd.f32 0.0, %v324
    %v326 = vpop.f32.mrb[0].mxu0
    %v327 = vadd.f32 0.0, %v326
    %328 = vmatprep.mubr.bf16.mxu0 0
    %329 = vmatmul.mubr.bf16.gmra.mrb[0].mxu0 %v182
    %v330 = vpop.f32.mrb[0].mxu0
    %v331 = vadd.f32 0.0, %v330
    %v332 = vpop.f32.mrb[0].mxu0
    %v333 = vadd.f32 0.0, %v332
    %v334 = vpop.f32.mrb[0].mxu0
    %v335 = vadd.f32 0.0, %v334
    %v336 = vpop.f32.mrb[0].mxu0
    %v337 = vadd.f32 0.0, %v336
    %338 = vmatprep.mubr.bf16.mxu0 0
    %339 = vmatmul.mubr.bf16.gmra.mrb[0].mxu0 %v183
    %v340 = vpop.f32.mrb[0].mxu0
    %v341 = vadd.f32 0.0, %v340
    %v342 = vpop.f32.mrb[0].mxu0
    %v343 = vadd.f32 0.0, %v342
    %v344 = vpop.f32.mrb[0].mxu0
    %v345 = vadd.f32 0.0, %v344
    %v346 = vpop.f32.mrb[0].mxu0
    %v347 = vadd.f32 0.0, %v346
    %348 = vmatprep.mubr.bf16.mxu0 0
    %349 = vmatmul.mubr.bf16.gmra.mrb[0].mxu0 %v184
    %v350 = vpop.f32.mrb[0].mxu0
    %v351 = vadd.f32 0.0, %v350
    %v352 = vpop.f32.mrb[0].mxu0
    %v353 = vadd.f32 0.0, %v352
    %v354 = vpop.f32.mrb[0].mxu0
    %v355 = vadd.f32 0.0, %v354
    %v356 = vpop.f32.mrb[0].mxu0
    %v357 = vadd.f32 0.0, %v356
    %358 = vmatprep.mubr.bf16.mxu0 0
    %359 = vmatmul.mubr.bf16.gmra.mrb[0].mxu0 %v185
    %v360 = vpop.f32.mrb[0].mxu0
    %v361 = vadd.f32 0.0, %v360
    %v362 = vpop.f32.mrb[0].mxu0
    %v363 = vadd.f32 0.0, %v362
    %v364 = vpop.f32.mrb[0].mxu0
    %v365 = vadd.f32 0.0, %v364
    %v366 = vpop.f32.mrb[0].mxu0
    %v367 = vadd.f32 0.0, %v366
    %368 = vmatprep.mubr.bf16.mxu0 0
    %369 = vmatmul.mubr.bf16.gmra.mrb[0].mxu0 %v186
    %v370 = vpop.f32.mrb[0].mxu0
    %v371 = vadd.f32 0.0, %v370
    %v372 = vpop.f32.mrb[0].mxu0
    %v373 = vadd.f32 0.0, %v372
    %v374 = vpop.f32.mrb[0].mxu0
    %v375 = vadd.f32 0.0, %v374
    %v376 = vpop.f32.mrb[0].mxu0
    %v377 = vadd.f32 0.0, %v376
    %378 = vmatprep.mubr.bf16.mxu0 0
    %379 = vmatmul.mubr.bf16.gmra.mrb[0].mxu0 %v187
    %v380 = vpop.f32.mrb[0].mxu0
    %v381 = vadd.f32 0.0, %v380
    %v382 = vpop.f32.mrb[0].mxu0
    %v383 = vadd.f32 0.0, %v382
    %v384 = vpop.f32.mrb[0].mxu0
    %v385 = vadd.f32 0.0, %v384
    %v386 = vpop.f32.mrb[0].mxu0
    %v387 = vadd.f32 0.0, %v386
    %388 = vdwg.mxu0
    %v389 = vpack.c.bf16 %v317, %v313
    %v390 = vpack.c.bf16 %v327, %v323
    %v391 = vpack.c.bf16 %v337, %v333
    %v392 = vpack.c.bf16 %v347, %v343
    %v393 = vpack.c.bf16 %v357, %v353
    %v394 = vpack.c.bf16 %v367, %v363
    %v395 = vpack.c.bf16 %v377, %v373
    %v396 = vpack.c.bf16 %v387, %v383
    %v413 = vunpack.c.l.b16 %v115
    %v414 = vunpack.c.l.b16 %v116
    %v415 = vunpack.c.l.b16 %v117
    %v416 = vunpack.c.l.b16 %v118
    %v417 = vunpack.c.l.b16 %v119
    %v418 = vunpack.c.l.b16 %v120
    %v419 = vunpack.c.l.b16 %v121
    %v420 = vunpack.c.l.b16 %v122
    %v421 = vunpack.c.l.b16 %v123
    %v422 = vunpack.c.l.b16 %v124
    %v423 = vunpack.c.l.b16 %v125
    %v424 = vunpack.c.l.b16 %v126
    %v425 = vunpack.c.l.b16 %v127
    %v426 = vunpack.c.l.b16 %v128
    %v427 = vunpack.c.l.b16 %v129
    %v428 = vunpack.c.l.b16 %v130
    %v429 = vpack.c.b16 %v414, %v413
    %v430 = vpack.c.b16 %v416, %v415
    %v431 = vpack.c.b16 %v418, %v417
    %v432 = vpack.c.b16 %v420, %v419
    %v433 = vpack.c.b16 %v422, %v421
    %v434 = vpack.c.b16 %v424, %v423
    %v435 = vpack.c.b16 %v426, %v425
    %v436 = vpack.c.b16 %v428, %v427
    %445 = vmatprep.subr.bf16.mxu0 0
    %446 = vmatpush1.bf16.msra.mxu0 %v389
    %447 = vmatprep.subr.bf16.mxu0 0
    %448 = vmatpush1.bf16.msra.mxu0 %v390
    %449 = vmatprep.subr.bf16.mxu0 0
    %450 = vmatpush1.bf16.msra.mxu0 %v391
    %451 = vmatprep.subr.bf16.mxu0 0
    %452 = vmatpush1.bf16.msra.mxu0 %v392
    %453 = vmatprep.subr.bf16.mxu0 0
    %454 = vmatpush1.bf16.msra.mxu0 %v393
    %455 = vmatprep.subr.bf16.mxu0 0
    %456 = vmatpush1.bf16.msra.mxu0 %v394
    %457 = vmatprep.subr.bf16.mxu0 0
    %458 = vmatpush1.bf16.msra.mxu0 %v395
    %459 = vmatprep.subr.bf16.mxu0 0
    %460 = vmatpush1.bf16.msra.mxu0 %v396
    %461 = vmatprep.subr.bf16.mxu0 0
    %462 = vmatpush1.bf16.msra.mxu0 0
    %463 = vmatprep.subr.bf16.mxu0 0
    %464 = vmatpush1.bf16.msra.mxu0 0
    %465 = vmatprep.subr.bf16.mxu0 0
    %466 = vmatpush1.bf16.msra.mxu0 0
    %467 = vmatprep.subr.bf16.mxu0 0
    %468 = vmatpush1.bf16.msra.mxu0 0
    %469 = vmatprep.subr.bf16.mxu0 0
    %470 = vmatpush1.bf16.msra.mxu0 0
    %471 = vmatprep.subr.bf16.mxu0 0
    %472 = vmatpush1.bf16.msra.mxu0 0
    %473 = vmatprep.subr.bf16.mxu0 0
    %474 = vmatpush1.bf16.msra.mxu0 0
    %475 = vmatprep.subr.bf16.mxu0 0
    %476 = vmatpush1.bf16.msra.mxu0 0
    %477 = vmatprep.mubr.bf16.mxu0 0
    %478 = vmatmul.mubr.bf16.gmra.mrb[0].mxu0 %v429
    %v479 = vpop.f32.mrb[0].mxu0
    %v480 = vadd.f32 0.0, %v479
    %v481 = vpop.f32.mrb[0].mxu0
    %v482 = vpop.f32.mrb[0].mxu0
    %v483 = vadd.f32 0.0, %v482
    %v484 = vpop.f32.mrb[0].mxu0
    %485 = vmatprep.mubr.bf16.mxu0 0
    %486 = vmatmul.mubr.bf16.gmra.mrb[0].mxu0 %v430
    %v487 = vpop.f32.mrb[0].mxu0
    %v488 = vadd.f32 0.0, %v487
    %v489 = vpop.f32.mrb[0].mxu0
    %v490 = vpop.f32.mrb[0].mxu0
    %v491 = vadd.f32 0.0, %v490
    %v492 = vpop.f32.mrb[0].mxu0
    %493 = vmatprep.mubr.bf16.mxu0 0
    %494 = vmatmul.mubr.bf16.gmra.mrb[0].mxu0 %v431
    %v495 = vpop.f32.mrb[0].mxu0
    %v496 = vadd.f32 0.0, %v495
    %v497 = vpop.f32.mrb[0].mxu0
    %v498 = vpop.f32.mrb[0].mxu0
    %v499 = vadd.f32 0.0, %v498
    %v500 = vpop.f32.mrb[0].mxu0
    %501 = vmatprep.mubr.bf16.mxu0 0
    %502 = vmatmul.mubr.bf16.gmra.mrb[0].mxu0 %v432
    %v503 = vpop.f32.mrb[0].mxu0
    %v504 = vadd.f32 0.0, %v503
    %v505 = vpop.f32.mrb[0].mxu0
    %v506 = vpop.f32.mrb[0].mxu0
    %v507 = vadd.f32 0.0, %v506
    %v508 = vpop.f32.mrb[0].mxu0
    %509 = vmatprep.mubr.bf16.mxu0 0
    %510 = vmatmul.mubr.bf16.gmra.mrb[0].mxu0 %v433
    %v511 = vpop.f32.mrb[0].mxu0
    %v512 = vadd.f32 0.0, %v511
    %v513 = vpop.f32.mrb[0].mxu0
    %v514 = vpop.f32.mrb[0].mxu0
    %v515 = vadd.f32 0.0, %v514
    %v516 = vpop.f32.mrb[0].mxu0
    %517 = vmatprep.mubr.bf16.mxu0 0
    %518 = vmatmul.mubr.bf16.gmra.mrb[0].mxu0 %v434
    %v519 = vpop.f32.mrb[0].mxu0
    %v520 = vadd.f32 0.0, %v519
    %v521 = vpop.f32.mrb[0].mxu0
    %v522 = vpop.f32.mrb[0].mxu0
    %v523 = vadd.f32 0.0, %v522
    %v524 = vpop.f32.mrb[0].mxu0
    %525 = vmatprep.mubr.bf16.mxu0 0
    %526 = vmatmul.mubr.bf16.gmra.mrb[0].mxu0 %v435
    %v527 = vpop.f32.mrb[0].mxu0
    %v528 = vadd.f32 0.0, %v527
    %v529 = vpop.f32.mrb[0].mxu0
    %v530 = vpop.f32.mrb[0].mxu0
    %v531 = vadd.f32 0.0, %v530
    %v532 = vpop.f32.mrb[0].mxu0
    %533 = vmatprep.mubr.bf16.mxu0 0
    %534 = vmatmul.mubr.bf16.gmra.mrb[0].mxu0 %v436
    %v535 = vpop.f32.mrb[0].mxu0
    %v536 = vadd.f32 0.0, %v535
    %v537 = vpop.f32.mrb[0].mxu0
    %v538 = vpop.f32.mrb[0].mxu0
    %v539 = vadd.f32 0.0, %v538
    %v540 = vpop.f32.mrb[0].mxu0
    %541 = vdwg.mxu0
    %v542 = vadd.f32 %v311, %v480
    %v543 = vadd.f32 %v315, %v483
    %v544 = vadd.f32 %v321, %v488
    %v545 = vadd.f32 %v325, %v491
    %v546 = vadd.f32 %v331, %v496
    %v547 = vadd.f32 %v335, %v499
    %v548 = vadd.f32 %v341, %v504
    %v549 = vadd.f32 %v345, %v507
    %v550 = vadd.f32 %v351, %v512
    %v551 = vadd.f32 %v355, %v515
    %v552 = vadd.f32 %v361, %v520
    %v553 = vadd.f32 %v365, %v523
    %v554 = vadd.f32 %v371, %v528
    %v555 = vadd.f32 %v375, %v531
    %v556 = vadd.f32 %v381, %v536
    %v557 = vadd.f32 %v385, %v539
    %v559 = vlaneseq
    %v560 = vshrl.u32 %v559, 7
    %v561 = vsub.s32 0, %v560
    %v562 = vrot.slane %v147, %v561
    %v564 = vadd.f32 %v542, %v562
    %v565 = vadd.f32 %v543, %v562
    %v566 = vadd.f32 %v544, %v562
    %v567 = vadd.f32 %v545, %v562
    %v568 = vadd.f32 %v546, %v562
    %v569 = vadd.f32 %v547, %v562
    %v570 = vadd.f32 %v548, %v562
    %v571 = vadd.f32 %v549, %v562
    %v572 = vadd.f32 %v550, %v562
    %v573 = vadd.f32 %v551, %v562
    %v574 = vadd.f32 %v552, %v562
    %v575 = vadd.f32 %v553, %v562
    %v576 = vadd.f32 %v554, %v562
    %v577 = vadd.f32 %v555, %v562
    %v578 = vadd.f32 %v556, %v562
    %v579 = vadd.f32 %v557, %v562
    %v580 = vmax.f32 %v564, 0.0
    %v581 = vmax.f32 %v565, 0.0
    %v582 = vmax.f32 %v566, 0.0
    %v583 = vmax.f32 %v567, 0.0
    %v584 = vmax.f32 %v568, 0.0
    %v585 = vmax.f32 %v569, 0.0
    %v586 = vmax.f32 %v570, 0.0
    %v587 = vmax.f32 %v571, 0.0
    %v588 = vmax.f32 %v572, 0.0
    %v589 = vmax.f32 %v573, 0.0
    %v590 = vmax.f32 %v574, 0.0
    %v591 = vmax.f32 %v575, 0.0
    %v592 = vmax.f32 %v576, 0.0
    %v593 = vmax.f32 %v577, 0.0
    %v594 = vmax.f32 %v578, 0.0
    %v595 = vmax.f32 %v579, 0.0
    %v596 = vpack.c.bf16 %v581, %v580
    %v597 = vpack.c.bf16 %v583, %v582
    %v598 = vpack.c.bf16 %v585, %v584
    %v599 = vpack.c.bf16 %v587, %v586
    %v600 = vpack.c.bf16 %v589, %v588
    %v601 = vpack.c.bf16 %v591, %v590
    %v602 = vpack.c.bf16 %v593, %v592
    %v603 = vpack.c.bf16 %v595, %v594
    %v604 = vld [vmem:[#allocation8] sm:$0xff]
    %v605 = vld [vmem:[#allocation8 + $0x8] sm:$0xff]
    %v606 = vld [vmem:[#allocation8 + $0x10] sm:$0xff]
    %v607 = vld [vmem:[#allocation8 + $0x18] sm:$0xff]
    %v608 = vld [vmem:[#allocation8 + $0x20] sm:$0xff]
    %v609 = vld [vmem:[#allocation8 + $0x28] sm:$0xff]
    %v610 = vld [vmem:[#allocation8 + $0x30] sm:$0xff]
    %v611 = vld [vmem:[#allocation8 + $0x38] sm:$0xff]
    %v612 = vld [vmem:[#allocation8 + $0x40] sm:$0xff]
    %v613 = vld [vmem:[#allocation8 + $0x48] sm:$0xff]
    %v614 = vld [vmem:[#allocation8 + $0x50] sm:$0xff]
    %v615 = vld [vmem:[#allocation8 + $0x58] sm:$0xff]
    %v616 = vld [vmem:[#allocation8 + $0x60] sm:$0xff]
    %v617 = vld [vmem:[#allocation8 + $0x68] sm:$0xff]
    %v618 = vld [vmem:[#allocation8 + $0x70] sm:$0xff]
    %v619 = vld [vmem:[#allocation8 + $0x78] sm:$0xff]
    %v620 = vld [vmem:[%s5] sm:$0x1]
    %v637 = vunpack.c.l.b16 %v604
    %v638 = vunpack.c.h.b16 %v604
    %v639 = vunpack.c.l.b16 %v605
    %v640 = vunpack.c.h.b16 %v605
    %v641 = vunpack.c.l.b16 %v606
    %v642 = vunpack.c.h.b16 %v606
    %v643 = vunpack.c.l.b16 %v607
    %v644 = vunpack.c.h.b16 %v607
    %v645 = vunpack.c.l.b16 %v608
    %v646 = vunpack.c.h.b16 %v608
    %v647 = vunpack.c.l.b16 %v609
    %v648 = vunpack.c.h.b16 %v609
    %v649 = vunpack.c.l.b16 %v610
    %v650 = vunpack.c.h.b16 %v610
    %v651 = vunpack.c.l.b16 %v611
    %v652 = vunpack.c.h.b16 %v611
    %v653 = vunpack.c.l.b16 %v612
    %v654 = vunpack.c.h.b16 %v612
    %v655 = vunpack.c.l.b16 %v613
    %v656 = vunpack.c.h.b16 %v613
    %v657 = vunpack.c.l.b16 %v614
    %v658 = vunpack.c.h.b16 %v614
    %v659 = vunpack.c.l.b16 %v615
    %v660 = vunpack.c.h.b16 %v615
    %v661 = vunpack.c.l.b16 %v616
    %v662 = vunpack.c.h.b16 %v616
    %v663 = vunpack.c.l.b16 %v617
    %v664 = vunpack.c.h.b16 %v617
    %v665 = vunpack.c.l.b16 %v618
    %v666 = vunpack.c.h.b16 %v618
    %v667 = vunpack.c.l.b16 %v619
    %v668 = vunpack.c.h.b16 %v619
    %v669 = vpack.c.b16 %v639, %v637
    %v670 = vpack.c.b16 %v640, %v638
    %v671 = vpack.c.b16 %v643, %v641
    %v672 = vpack.c.b16 %v644, %v642
    %v673 = vpack.c.b16 %v647, %v645
    %v674 = vpack.c.b16 %v648, %v646
    %v675 = vpack.c.b16 %v651, %v649
    %v676 = vpack.c.b16 %v652, %v650
    %v677 = vpack.c.b16 %v655, %v653
    %v678 = vpack.c.b16 %v656, %v654
    %v679 = vpack.c.b16 %v659, %v657
    %v680 = vpack.c.b16 %v660, %v658
    %v681 = vpack.c.b16 %v663, %v661
    %v682 = vpack.c.b16 %v664, %v662
    %v683 = vpack.c.b16 %v667, %v665
    %v684 = vpack.c.b16 %v668, %v666
    %701 = vmatprep.subr.bf16.mxu0 %v670
    %702 = vmatpush1.bf16.msra.mxu0 %v669
    %703 = vmatprep.subr.bf16.mxu0 %v672
    %704 = vmatpush1.bf16.msra.mxu0 %v671
    %705 = vmatprep.subr.bf16.mxu0 %v674
    %706 = vmatpush1.bf16.msra.mxu0 %v673
    %707 = vmatprep.subr.bf16.mxu0 %v676
    %708 = vmatpush1.bf16.msra.mxu0 %v675
    %709 = vmatprep.subr.bf16.mxu0 %v678
    %710 = vmatpush1.bf16.msra.mxu0 %v677
    %711 = vmatprep.subr.bf16.mxu0 %v680
    %712 = vmatpush1.bf16.msra.mxu0 %v679
    %713 = vmatprep.subr.bf16.mxu0 %v682
    %714 = vmatpush1.bf16.msra.mxu0 %v681
    %715 = vmatprep.subr.bf16.mxu0 %v684
    %716 = vmatpush1.bf16.msra.mxu0 %v683
    %717 = vmatprep.subr.bf16.mxu0 0
    %718 = vmatpush1.bf16.msra.mxu0 0
    %719 = vmatprep.subr.bf16.mxu0 0
    %720 = vmatpush1.bf16.msra.mxu0 0
    %721 = vmatprep.subr.bf16.mxu0 0
    %722 = vmatpush1.bf16.msra.mxu0 0
    %723 = vmatprep.subr.bf16.mxu0 0
    %724 = vmatpush1.bf16.msra.mxu0 0
    %725 = vmatprep.subr.bf16.mxu0 0
    %726 = vmatpush1.bf16.msra.mxu0 0
    %727 = vmatprep.subr.bf16.mxu0 0
    %728 = vmatpush1.bf16.msra.mxu0 0
    %729 = vmatprep.subr.bf16.mxu0 0
    %730 = vmatpush1.bf16.msra.mxu0 0
    %731 = vmatprep.subr.bf16.mxu0 0
    %732 = vmatpush1.bf16.msra.mxu0 0
    %733 = vmatprep.mubr.bf16.mxu0 0
    %734 = vmatmul.mubr.bf16.gmra.mrb[0].mxu0 %v596
    %v735 = vpop.f32.mrb[0].mxu0
    %v736 = vadd.f32 0.0, %v735
    %v737 = vpop.f32.mrb[0].mxu0
    %v738 = vadd.f32 0.0, %v737
    %v739 = vpop.f32.mrb[0].mxu0
    %v740 = vadd.f32 0.0, %v739
    %v741 = vpop.f32.mrb[0].mxu0
    %v742 = vadd.f32 0.0, %v741
    %743 = vmatprep.mubr.bf16.mxu0 0
    %744 = vmatmul.mubr.bf16.gmra.mrb[0].mxu0 %v597
    %v745 = vpop.f32.mrb[0].mxu0
    %v746 = vadd.f32 0.0, %v745
    %v747 = vpop.f32.mrb[0].mxu0
    %v748 = vadd.f32 0.0, %v747
    %v749 = vpop.f32.mrb[0].mxu0
    %v750 = vadd.f32 0.0, %v749
    %v751 = vpop.f32.mrb[0].mxu0
    %v752 = vadd.f32 0.0, %v751
    %753 = vmatprep.mubr.bf16.mxu0 0
    %754 = vmatmul.mubr.bf16.gmra.mrb[0].mxu0 %v598
    %v755 = vpop.f32.mrb[0].mxu0
    %v756 = vadd.f32 0.0, %v755
    %v757 = vpop.f32.mrb[0].mxu0
    %v758 = vadd.f32 0.0, %v757
    %v759 = vpop.f32.mrb[0].mxu0
    %v760 = vadd.f32 0.0, %v759
    %v761 = vpop.f32.mrb[0].mxu0
    %v762 = vadd.f32 0.0, %v761
    %763 = vmatprep.mubr.bf16.mxu0 0
    %764 = vmatmul.mubr.bf16.gmra.mrb[0].mxu0 %v599
    %v765 = vpop.f32.mrb[0].mxu0
    %v766 = vadd.f32 0.0, %v765
    %v767 = vpop.f32.mrb[0].mxu0
    %v768 = vadd.f32 0.0, %v767
    %v769 = vpop.f32.mrb[0].mxu0
    %v770 = vadd.f32 0.0, %v769
    %v771 = vpop.f32.mrb[0].mxu0
    %v772 = vadd.f32 0.0, %v771
    %773 = vmatprep.mubr.bf16.mxu0 0
    %774 = vmatmul.mubr.bf16.gmra.mrb[0].mxu0 %v600
    %v775 = vpop.f32.mrb[0].mxu0
    %v776 = vadd.f32 0.0, %v775
    %v777 = vpop.f32.mrb[0].mxu0
    %v778 = vadd.f32 0.0, %v777
    %v779 = vpop.f32.mrb[0].mxu0
    %v780 = vadd.f32 0.0, %v779
    %v781 = vpop.f32.mrb[0].mxu0
    %v782 = vadd.f32 0.0, %v781
    %783 = vmatprep.mubr.bf16.mxu0 0
    %784 = vmatmul.mubr.bf16.gmra.mrb[0].mxu0 %v601
    %v785 = vpop.f32.mrb[0].mxu0
    %v786 = vadd.f32 0.0, %v785
    %v787 = vpop.f32.mrb[0].mxu0
    %v788 = vadd.f32 0.0, %v787
    %v789 = vpop.f32.mrb[0].mxu0
    %v790 = vadd.f32 0.0, %v789
    %v791 = vpop.f32.mrb[0].mxu0
    %v792 = vadd.f32 0.0, %v791
    %793 = vmatprep.mubr.bf16.mxu0 0
    %794 = vmatmul.mubr.bf16.gmra.mrb[0].mxu0 %v602
    %v795 = vpop.f32.mrb[0].mxu0
    %v796 = vadd.f32 0.0, %v795
    %v797 = vpop.f32.mrb[0].mxu0
    %v798 = vadd.f32 0.0, %v797
    %v799 = vpop.f32.mrb[0].mxu0
    %v800 = vadd.f32 0.0, %v799
    %v801 = vpop.f32.mrb[0].mxu0
    %v802 = vadd.f32 0.0, %v801
    %803 = vmatprep.mubr.bf16.mxu0 0
    %804 = vmatmul.mubr.bf16.gmra.mrb[0].mxu0 %v603
    %v805 = vpop.f32.mrb[0].mxu0
    %v806 = vadd.f32 0.0, %v805
    %v807 = vpop.f32.mrb[0].mxu0
    %v808 = vadd.f32 0.0, %v807
    %v809 = vpop.f32.mrb[0].mxu0
    %v810 = vadd.f32 0.0, %v809
    %v811 = vpop.f32.mrb[0].mxu0
    %v812 = vadd.f32 0.0, %v811
    %813 = vdwg.mxu0
    %v814 = vpack.c.bf16 %v742, %v738
    %v815 = vpack.c.bf16 %v752, %v748
    %v816 = vpack.c.bf16 %v762, %v758
    %v817 = vpack.c.bf16 %v772, %v768
    %v818 = vpack.c.bf16 %v782, %v778
    %v819 = vpack.c.bf16 %v792, %v788
    %v820 = vpack.c.bf16 %v802, %v798
    %v821 = vpack.c.bf16 %v812, %v808
    %822 = vmatprep.subr.bf16.mxu0 0
    %823 = vmatpush1.bf16.msra.mxu0 %v814
    %824 = vmatprep.subr.bf16.mxu0 0
    %825 = vmatpush1.bf16.msra.mxu0 %v815
    %826 = vmatprep.subr.bf16.mxu0 0
    %827 = vmatpush1.bf16.msra.mxu0 %v816
    %828 = vmatprep.subr.bf16.mxu0 0
    %829 = vmatpush1.bf16.msra.mxu0 %v817
    %830 = vmatprep.subr.bf16.mxu0 0
    %831 = vmatpush1.bf16.msra.mxu0 %v818
    %832 = vmatprep.subr.bf16.mxu0 0
    %833 = vmatpush1.bf16.msra.mxu0 %v819
    %834 = vmatprep.subr.bf16.mxu0 0
    %835 = vmatpush1.bf16.msra.mxu0 %v820
    %836 = vmatprep.subr.bf16.mxu0 0
    %837 = vmatpush1.bf16.msra.mxu0 %v821
    %838 = vmatprep.subr.bf16.mxu0 0
    %839 = vmatpush1.bf16.msra.mxu0 0
    %840 = vmatprep.subr.bf16.mxu0 0
    %841 = vmatpush1.bf16.msra.mxu0 0
    %842 = vmatprep.subr.bf16.mxu0 0
    %843 = vmatpush1.bf16.msra.mxu0 0
    %844 = vmatprep.subr.bf16.mxu0 0
    %845 = vmatpush1.bf16.msra.mxu0 0
    %846 = vmatprep.subr.bf16.mxu0 0
    %847 = vmatpush1.bf16.msra.mxu0 0
    %848 = vmatprep.subr.bf16.mxu0 0
    %849 = vmatpush1.bf16.msra.mxu0 0
    %850 = vmatprep.subr.bf16.mxu0 0
    %851 = vmatpush1.bf16.msra.mxu0 0
    %852 = vmatprep.subr.bf16.mxu0 0
    %853 = vmatpush1.bf16.msra.mxu0 0
    %854 = vmatprep.mubr.bf16.mxu0 0
    %855 = vmatmul.mubr.bf16.gmra.mrb[0].mxu0 %v429
    %v856 = vpop.f32.mrb[0].mxu0
    %v857 = vadd.f32 0.0, %v856
    %v858 = vpop.f32.mrb[0].mxu0
    %v859 = vpop.f32.mrb[0].mxu0
    %v860 = vadd.f32 0.0, %v859
    %v861 = vpop.f32.mrb[0].mxu0
    %862 = vmatprep.mubr.bf16.mxu0 0
    %863 = vmatmul.mubr.bf16.gmra.mrb[0].mxu0 %v430
    %v864 = vpop.f32.mrb[0].mxu0
    %v865 = vadd.f32 0.0, %v864
    %v866 = vpop.f32.mrb[0].mxu0
    %v867 = vpop.f32.mrb[0].mxu0
    %v868 = vadd.f32 0.0, %v867
    %v869 = vpop.f32.mrb[0].mxu0
    %870 = vmatprep.mubr.bf16.mxu0 0
    %871 = vmatmul.mubr.bf16.gmra.mrb[0].mxu0 %v431
    %v872 = vpop.f32.mrb[0].mxu0
    %v873 = vadd.f32 0.0, %v872
    %v874 = vpop.f32.mrb[0].mxu0
    %v875 = vpop.f32.mrb[0].mxu0
    %v876 = vadd.f32 0.0, %v875
    %v877 = vpop.f32.mrb[0].mxu0
    %878 = vmatprep.mubr.bf16.mxu0 0
    %879 = vmatmul.mubr.bf16.gmra.mrb[0].mxu0 %v432
    %v880 = vpop.f32.mrb[0].mxu0
    %v881 = vadd.f32 0.0, %v880
    %v882 = vpop.f32.mrb[0].mxu0
    %v883 = vpop.f32.mrb[0].mxu0
    %v884 = vadd.f32 0.0, %v883
    %v885 = vpop.f32.mrb[0].mxu0
    %886 = vmatprep.mubr.bf16.mxu0 0
    %887 = vmatmul.mubr.bf16.gmra.mrb[0].mxu0 %v433
    %v888 = vpop.f32.mrb[0].mxu0
    %v889 = vadd.f32 0.0, %v888
    %v890 = vpop.f32.mrb[0].mxu0
    %v891 = vpop.f32.mrb[0].mxu0
    %v892 = vadd.f32 0.0, %v891
    %v893 = vpop.f32.mrb[0].mxu0
    %894 = vmatprep.mubr.bf16.mxu0 0
    %895 = vmatmul.mubr.bf16.gmra.mrb[0].mxu0 %v434
    %v896 = vpop.f32.mrb[0].mxu0
    %v897 = vadd.f32 0.0, %v896
    %v898 = vpop.f32.mrb[0].mxu0
    %v899 = vpop.f32.mrb[0].mxu0
    %v900 = vadd.f32 0.0, %v899
    %v901 = vpop.f32.mrb[0].mxu0
    %902 = vmatprep.mubr.bf16.mxu0 0
    %903 = vmatmul.mubr.bf16.gmra.mrb[0].mxu0 %v435
    %v904 = vpop.f32.mrb[0].mxu0
    %v905 = vadd.f32 0.0, %v904
    %v906 = vpop.f32.mrb[0].mxu0
    %v907 = vpop.f32.mrb[0].mxu0
    %v908 = vadd.f32 0.0, %v907
    %v909 = vpop.f32.mrb[0].mxu0
    %910 = vmatprep.mubr.bf16.mxu0 0
    %911 = vmatmul.mubr.bf16.gmra.mrb[0].mxu0 %v436
    %v912 = vpop.f32.mrb[0].mxu0
    %v913 = vadd.f32 0.0, %v912
    %v914 = vpop.f32.mrb[0].mxu0
    %v915 = vpop.f32.mrb[0].mxu0
    %v916 = vadd.f32 0.0, %v915
    %v917 = vpop.f32.mrb[0].mxu0
    %918 = vdwg.mxu0
    %v919 = vadd.f32 %v736, %v857
    %v920 = vadd.f32 %v740, %v860
    %v921 = vadd.f32 %v746, %v865
    %v922 = vadd.f32 %v750, %v868
    %v923 = vadd.f32 %v756, %v873
    %v924 = vadd.f32 %v760, %v876
    %v925 = vadd.f32 %v766, %v881
    %v926 = vadd.f32 %v770, %v884
    %v927 = vadd.f32 %v776, %v889
    %v928 = vadd.f32 %v780, %v892
    %v929 = vadd.f32 %v786, %v897
    %v930 = vadd.f32 %v790, %v900
    %v931 = vadd.f32 %v796, %v905
    %v932 = vadd.f32 %v800, %v908
    %v933 = vadd.f32 %v806, %v913
    %v934 = vadd.f32 %v810, %v916
    %v936 = vlaneseq
    %v937 = vshrl.u32 %v936, 7
    %v938 = vsub.s32 0, %v937
    %v939 = vrot.slane %v620, %v938
    %v941 = vadd.f32 %v919, %v939
    %v942 = vadd.f32 %v920, %v939
    %v943 = vadd.f32 %v921, %v939
    %v944 = vadd.f32 %v922, %v939
    %v945 = vadd.f32 %v923, %v939
    %v946 = vadd.f32 %v924, %v939
    %v947 = vadd.f32 %v925, %v939
    %v948 = vadd.f32 %v926, %v939
    %v949 = vadd.f32 %v927, %v939
    %v950 = vadd.f32 %v928, %v939
    %v951 = vadd.f32 %v929, %v939
    %v952 = vadd.f32 %v930, %v939
    %v953 = vadd.f32 %v931, %v939
    %v954 = vadd.f32 %v932, %v939
    %v955 = vadd.f32 %v933, %v939
    %v956 = vadd.f32 %v934, %v939
    %v957 = vmax.f32 %v941, 0.0
    %v958 = vmax.f32 %v942, 0.0
    %v959 = vmax.f32 %v943, 0.0
    %v960 = vmax.f32 %v944, 0.0
    %v961 = vmax.f32 %v945, 0.0
    %v962 = vmax.f32 %v946, 0.0
    %v963 = vmax.f32 %v947, 0.0
    %v964 = vmax.f32 %v948, 0.0
    %v965 = vmax.f32 %v949, 0.0
    %v966 = vmax.f32 %v950, 0.0
    %v967 = vmax.f32 %v951, 0.0
    %v968 = vmax.f32 %v952, 0.0
    %v969 = vmax.f32 %v953, 0.0
    %v970 = vmax.f32 %v954, 0.0
    %v971 = vmax.f32 %v955, 0.0
    %v972 = vmax.f32 %v956, 0.0
    %v973 = vpack.c.bf16 %v958, %v957
    %v974 = vpack.c.bf16 %v960, %v959
    %v975 = vpack.c.bf16 %v962, %v961
    %v976 = vpack.c.bf16 %v964, %v963
    %v977 = vpack.c.bf16 %v966, %v965
    %v978 = vpack.c.bf16 %v968, %v967
    %v979 = vpack.c.bf16 %v970, %v969
    %v980 = vpack.c.bf16 %v972, %v971
    %v981 = vld [vmem:[#allocation10] sm:$0xf]
    %v982 = vld [vmem:[#allocation10 + $0x4] sm:$0xf]
    %v983 = vld [vmem:[#allocation10 + $0x8] sm:$0xf]
    %v984 = vld [vmem:[#allocation10 + $0xc] sm:$0xf]
    %v985 = vld [vmem:[#allocation10 + $0x10] sm:$0xf]
    %v986 = vld [vmem:[#allocation10 + $0x14] sm:$0xf]
    %v987 = vld [vmem:[#allocation10 + $0x18] sm:$0xf]
    %v988 = vld [vmem:[#allocation10 + $0x1c] sm:$0xf]
    %v989 = vld [vmem:[#allocation10 + $0x20] sm:$0xf]
    %v990 = vld [vmem:[#allocation10 + $0x24] sm:$0xf]
    %v991 = vld [vmem:[#allocation10 + $0x28] sm:$0xf]
    %v992 = vld [vmem:[#allocation10 + $0x2c] sm:$0xf]
    %v993 = vld [vmem:[#allocation10 + $0x30] sm:$0xf]
    %v994 = vld [vmem:[#allocation10 + $0x34] sm:$0xf]
    %v995 = vld [vmem:[#allocation10 + $0x38] sm:$0xf]
    %v996 = vld [vmem:[#allocation10 + $0x3c] sm:$0xf]
    %v997 = vld [vmem:[%s7] sm:$0x1]
    %v999 = vlaneseq
    %v1000 = vshrl.u32 %v999, 7
    %v1001 = vsub.s32 0, %v1000
    %v1002 = vrot.slane %v997, %v1001
    %v1020 = vunpack.c.l.b16 %v981
    %v1021 = vunpack.c.l.b16 %v982
    %v1022 = vunpack.c.l.b16 %v983
    %v1023 = vunpack.c.l.b16 %v984
    %v1024 = vunpack.c.l.b16 %v985
    %v1025 = vunpack.c.l.b16 %v986
    %v1026 = vunpack.c.l.b16 %v987
    %v1027 = vunpack.c.l.b16 %v988
    %v1028 = vunpack.c.l.b16 %v989
    %v1029 = vunpack.c.l.b16 %v990
    %v1030 = vunpack.c.l.b16 %v991
    %v1031 = vunpack.c.l.b16 %v992
    %v1032 = vunpack.c.l.b16 %v993
    %v1033 = vunpack.c.l.b16 %v994
    %v1034 = vunpack.c.l.b16 %v995
    %v1035 = vunpack.c.l.b16 %v996
    %v1036 = vpack.c.b16 %v1021, %v1020
    %v1037 = vpack.c.b16 %v1023, %v1022
    %v1038 = vpack.c.b16 %v1025, %v1024
    %v1039 = vpack.c.b16 %v1027, %v1026
    %v1040 = vpack.c.b16 %v1029, %v1028
    %v1041 = vpack.c.b16 %v1031, %v1030
    %v1042 = vpack.c.b16 %v1033, %v1032
    %v1043 = vpack.c.b16 %v1035, %v1034
    %1052 = vmatprep.subr.bf16.mxu0 0
    %1053 = vmatpush1.bf16.msra.mxu0 %v1036
    %1054 = vmatprep.subr.bf16.mxu0 0
    %1055 = vmatpush1.bf16.msra.mxu0 %v1037
    %1056 = vmatprep.subr.bf16.mxu0 0
    %1057 = vmatpush1.bf16.msra.mxu0 %v1038
    %1058 = vmatprep.subr.bf16.mxu0 0
    %1059 = vmatpush1.bf16.msra.mxu0 %v1039
    %1060 = vmatprep.subr.bf16.mxu0 0
    %1061 = vmatpush1.bf16.msra.mxu0 %v1040
    %1062 = vmatprep.subr.bf16.mxu0 0
    %1063 = vmatpush1.bf16.msra.mxu0 %v1041
    %1064 = vmatprep.subr.bf16.mxu0 0
    %1065 = vmatpush1.bf16.msra.mxu0 %v1042
    %1066 = vmatprep.subr.bf16.mxu0 0
    %1067 = vmatpush1.bf16.msra.mxu0 %v1043
    %1068 = vmatprep.subr.bf16.mxu0 0
    %1069 = vmatpush1.bf16.msra.mxu0 0
    %1070 = vmatprep.subr.bf16.mxu0 0
    %1071 = vmatpush1.bf16.msra.mxu0 0
    %1072 = vmatprep.subr.bf16.mxu0 0
    %1073 = vmatpush1.bf16.msra.mxu0 0
    %1074 = vmatprep.subr.bf16.mxu0 0
    %1075 = vmatpush1.bf16.msra.mxu0 0
    %1076 = vmatprep.subr.bf16.mxu0 0
    %1077 = vmatpush1.bf16.msra.mxu0 0
    %1078 = vmatprep.subr.bf16.mxu0 0
    %1079 = vmatpush1.bf16.msra.mxu0 0
    %1080 = vmatprep.subr.bf16.mxu0 0
    %1081 = vmatpush1.bf16.msra.mxu0 0
    %1082 = vmatprep.subr.bf16.mxu0 0
    %1083 = vmatpush1.bf16.msra.mxu0 0
    %1084 = vmatprep.mubr.bf16.mxu0 0
    %1085 = vmatmul.mubr.bf16.gmra.mrb[0].mxu0 %v973
    %v1086 = vpop.f32.mrb[0].mxu0
    %v1087 = vadd.f32 %v1002, %v1086
    %v1088 = vpop.f32.mrb[0].mxu0
    %v1089 = vpop.f32.mrb[0].mxu0
    %v1090 = vadd.f32 %v1002, %v1089
    %v1091 = vpop.f32.mrb[0].mxu0
    %1092 = vmatprep.mubr.bf16.mxu0 0
    %1093 = vmatmul.mubr.bf16.gmra.mrb[0].mxu0 %v974
    %v1094 = vpop.f32.mrb[0].mxu0
    %v1095 = vadd.f32 %v1002, %v1094
    %v1096 = vpop.f32.mrb[0].mxu0
    %v1097 = vpop.f32.mrb[0].mxu0
    %v1098 = vadd.f32 %v1002, %v1097
    %v1099 = vpop.f32.mrb[0].mxu0
    %1100 = vmatprep.mubr.bf16.mxu0 0
    %1101 = vmatmul.mubr.bf16.gmra.mrb[0].mxu0 %v975
    %v1102 = vpop.f32.mrb[0].mxu0
    %v1103 = vadd.f32 %v1002, %v1102
    %v1104 = vpop.f32.mrb[0].mxu0
    %v1105 = vpop.f32.mrb[0].mxu0
    %v1106 = vadd.f32 %v1002, %v1105
    %v1107 = vpop.f32.mrb[0].mxu0
    %1108 = vmatprep.mubr.bf16.mxu0 0
    %1109 = vmatmul.mubr.bf16.gmra.mrb[0].mxu0 %v976
    %v1110 = vpop.f32.mrb[0].mxu0
    %v1111 = vadd.f32 %v1002, %v1110
    %v1112 = vpop.f32.mrb[0].mxu0
    %v1113 = vpop.f32.mrb[0].mxu0
    %v1114 = vadd.f32 %v1002, %v1113
    %v1115 = vpop.f32.mrb[0].mxu0
    %1116 = vmatprep.mubr.bf16.mxu0 0
    %1117 = vmatmul.mubr.bf16.gmra.mrb[0].mxu0 %v977
    %v1118 = vpop.f32.mrb[0].mxu0
    %v1119 = vadd.f32 %v1002, %v1118
    %v1120 = vpop.f32.mrb[0].mxu0
    %v1121 = vpop.f32.mrb[0].mxu0
    %v1122 = vadd.f32 %v1002, %v1121
    %v1123 = vpop.f32.mrb[0].mxu0
    %1124 = vmatprep.mubr.bf16.mxu0 0
    %1125 = vmatmul.mubr.bf16.gmra.mrb[0].mxu0 %v978
    %v1126 = vpop.f32.mrb[0].mxu0
    %v1127 = vadd.f32 %v1002, %v1126
    %v1128 = vpop.f32.mrb[0].mxu0
    %v1129 = vpop.f32.mrb[0].mxu0
    %v1130 = vadd.f32 %v1002, %v1129
    %v1131 = vpop.f32.mrb[0].mxu0
    %1132 = vmatprep.mubr.bf16.mxu0 0
    %1133 = vmatmul.mubr.bf16.gmra.mrb[0].mxu0 %v979
    %v1134 = vpop.f32.mrb[0].mxu0
    %v1135 = vadd.f32 %v1002, %v1134
    %v1136 = vpop.f32.mrb[0].mxu0
    %v1137 = vpop.f32.mrb[0].mxu0
    %v1138 = vadd.f32 %v1002, %v1137
    %v1139 = vpop.f32.mrb[0].mxu0
    %1140 = vmatprep.mubr.bf16.mxu0 0
    %1141 = vmatmul.mubr.bf16.gmra.mrb[0].mxu0 %v980
    %v1142 = vpop.f32.mrb[0].mxu0
    %v1143 = vadd.f32 %v1002, %v1142
    %v1144 = vpop.f32.mrb[0].mxu0
    %v1145 = vpop.f32.mrb[0].mxu0
    %v1146 = vadd.f32 %v1002, %v1145
    %v1147 = vpop.f32.mrb[0].mxu0
    %1148 = vdwg.mxu0
    %1149 = vst [vmem:[#allocation11] sm:$0xff] %v1087
    %1150 = vst [vmem:[#allocation11 + $0x8] sm:$0xff] %v1090
    %1151 = vst [vmem:[#allocation11 + $0x10] sm:$0xff] %v1095
    %1152 = vst [vmem:[#allocation11 + $0x18] sm:$0xff] %v1098
    %1153 = vst [vmem:[#allocation11 + $0x20] sm:$0xff] %v1103
    %1154 = vst [vmem:[#allocation11 + $0x28] sm:$0xff] %v1106
    %1155 = vst [vmem:[#allocation11 + $0x30] sm:$0xff] %v1111
    %1156 = vst [vmem:[#allocation11 + $0x38] sm:$0xff] %v1114
    %1157 = vst [vmem:[#allocation11 + $0x40] sm:$0xff] %v1119
    %1158 = vst [vmem:[#allocation11 + $0x48] sm:$0xff] %v1122
    %1159 = vst [vmem:[#allocation11 + $0x50] sm:$0xff] %v1127
    %1160 = vst [vmem:[#allocation11 + $0x58] sm:$0xff] %v1130
    %1161 = vst [vmem:[#allocation11 + $0x60] sm:$0xff] %v1135
    %1162 = vst [vmem:[#allocation11 + $0x68] sm:$0xff] %v1138
    %1163 = vst [vmem:[#allocation11 + $0x70] sm:$0xff] %v1143
    %1164 = vst [vmem:[#allocation11 + $0x78] sm:$0xff] %v1146
    // Predicated region
    $region54: #{tpu_custom_call.1} parent=1 // pred_check
      _
    $region55: #{tpu_custom_call.1} parent=1 // pred_check_branch
      %1166 = sbr.rel (0) target = $region57
    $region56: #{tpu_custom_call.1} parent=1 // pred_region
      %s1168 = ssub.s32 2048, 2048
      %1169 = vsyncadd [#allocation4], %s1168
      %s1170 = sshll.u32 [#allocation11], 4
      %s1171 = int_to_ptr.vmem [resolvable:$true] %s1170
      %1176 = dma.vmem_to_hbm [thread:$0]  %s1171, 2048, %s8, [#allocation4], 128, 128, 8
    $region57: #{tpu_custom_call.1} parent=1 // pred_fallthru
      _
    // Predicated region
    $region58: #{tpu_custom_call.1} parent=1 // pred_check
      _
    $region59: #{tpu_custom_call.1} parent=1 // pred_check_branch
      %1178 = sbr.rel (0) target = $region61
    $region60: #{tpu_custom_call.1} parent=1 // pred_region
      %1179 = dma.done [#allocation4], 2048
    $region61: #{tpu_custom_call.1} parent=1 // pred_fallthru
      _
    %1180 = vsyncpa [#allocation3], 1
    %1181 = vsyncpa [#allocation6], 1
    %1182 = vsyncpa [#allocation9], 1
    %1183 = vsyncpa [#allocation4], 1

</llo_original>
